<compile_context>
chip_gen: v5e
topology: v5e:2x2
jax: 0.10.0
libtpu: 0.0.40
codegen_flags: <defaults>
</compile_context>

<pallas_src>
import jax
import jax.numpy as jnp
from jax.experimental import pallas as pl
from jax.experimental.pallas import tpu as pltpu


# ----------------------------- Pallas kernel ------------------------------

def _pos_enc_kernel(x_ref, p_ref, o_ref):
    # x_ref: (block_B, block_L); p_ref: (1, block_L); o_ref: (block_B, block_L)
    # Widen to f32 in-register for the add (v5e has no bf16 VALU; the cast is
    # VPU filler under the DMA elsewhere), keep HBM/VMEM traffic in X's dtype.
    x = x_ref[...].astype(jnp.float32)
    p = p_ref[...].astype(jnp.float32)
    o_ref[...] = (x + p).astype(o_ref.dtype)


def _choose_blocks(n_rows, n_lanes, itemsize, target_bytes=2 * 1024 * 1024):
    """Pick a (block_rows, block_lanes) tile of ~target_bytes for the x slab.

    Sized so 2-deep buffering of (x, p, out) stays a few MiB -> fits v5e's
    16 MiB default scoped VMEM and v7x's smaller physical VMEM without tuning.
    Full-extent blocks are used when an axis is not (8, 128)-aligned.
    """
    if n_lanes % 128 == 0:
        max_lanes = max(128, (target_bytes // (8 * itemsize)) // 128 * 128)
        block_lanes = min(n_lanes, max_lanes)
    else:
        block_lanes = n_lanes            # full-extent block is always legal
    if n_rows % 8 == 0:
        rows = max(8, (target_bytes // max(1, block_lanes * itemsize)) // 8 * 8)
        block_rows = min(n_rows, rows)
    else:
        block_rows = n_rows              # full-extent block is always legal
    return block_rows, block_lanes


def _pos_enc_pallas(x_flat, p_flat):
    """x_flat: (B, L), p_flat: (1, L) (same dtype) -> (B, L) = x + p."""
    B, L = x_flat.shape
    block_B, block_L = _choose_blocks(B, L, x_flat.dtype.itemsize)
    # Lane blocks outer, row blocks inner: P's block index is constant across
    # the inner row steps, so the table tile stays resident in VMEM.
    grid = (pl.cdiv(L, block_L), pl.cdiv(B, block_B))
    return pl.pallas_call(
        _pos_enc_kernel,
        grid=grid,
        in_specs=[
            pl.BlockSpec((block_B, block_L), lambda j, i: (i, j)),
            pl.BlockSpec((1, block_L), lambda j, i: (0, j)),
        ],
        out_specs=pl.BlockSpec((block_B, block_L), lambda j, i: (i, j)),
        out_shape=jax.ShapeDtypeStruct((B, L), x_flat.dtype),
        compiler_params=pltpu.CompilerParams(
            dimension_semantics=("parallel", "parallel"),
            vmem_limit_bytes=32 * 1024 * 1024),
    )(x_flat, p_flat)


# ------------------------------ module analogue ----------------------------

def make_positional_encoding_table(max_len, num_hiddens):
    """__init__ part: the (max_len, num_hiddens) sin/cos table (float32)."""
    pos = jnp.arange(max_len, dtype=jnp.float32)[:, None]                 # (L, 1)
    div = jnp.power(
        10000.0,
        jnp.arange(0, num_hiddens, 2, dtype=jnp.float32) / num_hiddens)   # (ceil(D/2),)
    ang = pos / div                                                        # (L, ceil(D/2))
    P = jnp.zeros((max_len, num_hiddens), jnp.float32)
    P = P.at[:, 0::2].set(jnp.sin(ang))
    P = P.at[:, 1::2].set(jnp.cos(ang[:, : num_hiddens // 2]))             # odd-D safe
    return P


class PositionalEncoding:
    """JAX/Pallas analogue of the d2l PositionalEncoding module."""

    def __init__(self, num_hiddens, dropout=0.0, max_len=1000):
        self.num_hiddens = num_hiddens
        self.dropout = dropout
        self.P = make_positional_encoding_table(max_len, num_hiddens)  # (max_len, D)
        self._p_flat_cache = {}  # (T, dtype name) -> (1, T*D) dtype-matched table

    def _p_flat(self, T, dtype):
        key = (T, jnp.dtype(dtype).name)
        if key not in self._p_flat_cache:
            self._p_flat_cache[key] = (
                self.P[:T].reshape(1, T * self.num_hiddens).astype(dtype))
        return self._p_flat_cache[key]

    def __call__(self, X, training=False):
        B, T, D = X.shape
        assert D == self.num_hiddens
        x_flat = X.reshape(B, T * D)
        p_flat = self._p_flat(T, X.dtype)
        out = _pos_enc_pallas(x_flat, p_flat)
        # TODO(synk): training-mode dropout (p > 0) is not implemented; it
        # would fuse in-kernel via pltpu.prng_seed + pltpu.prng_random_bits +
        # jnp.where. This is the deterministic eval / p=0 path.
        return out.reshape(B, T, D)


# -------------------------- pure-JAX reference -----------------------------

def _ref_forward(X, P_table):
    T = X.shape[1]
    return X + P_table[None, :T, :].astype(X.dtype)


# ---------------------------------- main ------------------------------------

if __name__ == "__main__":
    B, T, D = 2, 8, 32            # batch, seq, num_hiddens
    MAX_LEN = 1000                # module default

    key = jax.random.PRNGKey(0)
    X = jax.random.normal(key, (B, T, D), jnp.float32)

    pe = PositionalEncoding(D, dropout=0.0, max_len=MAX_LEN)

    # float32 path
    out = jax.block_until_ready(pe(X))
    ref = _ref_forward(X, pe.P)
    assert out.shape == (B, T, D) and out.dtype == X.dtype
    assert jnp.allclose(out, ref, rtol=1e-6, atol=1e-6), (
        float(jnp.max(jnp.abs(out - ref))))

    # bf16 path: output keeps the input dtype (no wrapper-side f32 upcast).
    X_bf = X.astype(jnp.bfloat16)
    out_bf = jax.block_until_ready(pe(X_bf))
    ref_bf = (X_bf.astype(jnp.float32)
              + pe.P[None, :T, :].astype(jnp.bfloat16).astype(jnp.float32))
    assert out_bf.dtype == jnp.bfloat16
    assert jnp.allclose(out_bf.astype(jnp.float32), ref_bf,
                        rtol=2e-2, atol=2e-2)

    print("KERNEL_OK")
</pallas_src>

<mosaic_0001>
module attributes {stable_mosaic.version = 11 : i64} {
  func.func @_pos_enc_kernel(%arg0: i32, %arg1: i32, %arg2: memref<2x256xf32, #tpu.memory_space<vmem>>, %arg3: memref<1x256xf32, #tpu.memory_space<vmem>>, %arg4: memref<2x256xf32, #tpu.memory_space<vmem>>) attributes {dimension_semantics = [#tpu.dimension_semantics<parallel>, #tpu.dimension_semantics<parallel>], iteration_bounds = array<i64: 1, 1>, scalar_prefetch = 0 : i64, scratch_operands = 0 : i64, tpu.core_type = #tpu.core_type<tc>, window_params = [{transform_indices = @transform_0, window_bounds = array<i64: 2, 256>}, {transform_indices = @transform_1, window_bounds = array<i64: 1, 256>}, {transform_indices = @transform_2, window_bounds = array<i64: 2, 256>}]} {
    %c0 = arith.constant 0 : index
    %c0_0 = arith.constant 0 : index
    %0 = vector.load %arg2[%c0, %c0_0] : memref<2x256xf32, #tpu.memory_space<vmem>>, vector<2x256xf32>
    %c0_1 = arith.constant 0 : index
    %c0_2 = arith.constant 0 : index
    %1 = vector.load %arg3[%c0_1, %c0_2] : memref<1x256xf32, #tpu.memory_space<vmem>>, vector<1x256xf32>
    %2 = vector.broadcast %1 : vector<1x256xf32> to vector<2x256xf32>
    %3 = arith.addf %0, %2 : vector<2x256xf32>
    %c0_3 = arith.constant 0 : index
    %c0_4 = arith.constant 0 : index
    %4 = vector.load %arg4[%c0_3, %c0_4] : memref<2x256xf32, #tpu.memory_space<vmem>>, vector<2x256xf32>
    tpu.vector_store %arg4[%c0_3, %c0_4], %3 {strides = array<i32>} : memref<2x256xf32, #tpu.memory_space<vmem>>, vector<2x256xf32>,
    return
  }
  func.func @transform_0(%arg0: i32, %arg1: i32) -> (i32, i32) {
    %c0_i32 = arith.constant 0 : i32
    return %arg1, %arg0 : i32, i32
  }
  func.func @transform_1(%arg0: i32, %arg1: i32) -> (i32, i32) {
    %c0_i32 = arith.constant 0 : i32
    %c0_i32_0 = arith.constant 0 : i32
    return %c0_i32, %arg0 : i32, i32
  }
  func.func @transform_2(%arg0: i32, %arg1: i32) -> (i32, i32) {
    %c0_i32 = arith.constant 0 : i32
    return %arg1, %arg0 : i32, i32
  }
}

</mosaic_0001>

<llo_original>
// kernel: tpu_custom_call.1
$region0: #{tpu_custom_call.1}
  #allocation0 [shape = 'u32[]', space=smem, size = 0x4, offset = 0x4, fixed_abs, tag = 'smem constant byte address 0x4 - core index']
  #allocation1 [shape = 'u32[72,128]{1,0:T(1,128)}', space=vmem, size = 0x9000, scoped, tag = 'internal scratch']
  %s0 = inlined_call_operand.hbm [shape: f32[2,256], index: 0, kind: input, shape index: {}]
  %s1 = inlined_call_operand.hbm [shape: f32[1,256], index: 1, kind: input, shape index: {}]
  %s2 = inlined_call_operand.hbm [shape: f32[2,256], index: 2, kind: output, shape index: {}]
  %s3 = sld [smem:[#allocation0]]
  $region26: #{tpu_custom_call.1} parent=0
    _
  %s5 = ssub.s32 1, %s3
  %s6 = scalar_select 0, %s5, %s3
  $region1: #{tpu_custom_call.1} parent=0
    #allocation2 [shape = 'u8[2048]{0}', space=vmem, size = 0x800, scoped, tag = 'input window, operand 0, single buffered']
    #allocation3 [shape = 's32[1]{0}', space=sflag, size = 0x4, scoped, tag = 'scoped memory for tpu_custom_call.1']
    #allocation4 [shape = 's32[1]{0}', space=sflag, size = 0x4, scoped, tag = 'scoped memory for tpu_custom_call.1']
    #allocation5 [shape = 'u8[1024]{0}', space=vmem, size = 0x400, scoped, tag = 'input window, operand 1, single buffered']
    #allocation6 [shape = 's32[1]{0}', space=sflag, size = 0x4, scoped, tag = 'scoped memory for tpu_custom_call.1']
    #allocation7 [shape = 'u8[2048]{0}', space=vmem, size = 0x800, scoped, tag = 'output window, operand 0, single buffered']
    %7 = vsyncpa [#allocation3], 0
    %8 = vsyncpa [#allocation6], 0
    %9 = vsyncpa [#allocation4], 0
    // Predicated region
    $region2: #{tpu_custom_call.1} parent=1 // pred_check
      _
    $region3: #{tpu_custom_call.1} parent=1 // pred_check_branch
      %11 = sbr.rel (0) target = $region5
    $region4: #{tpu_custom_call.1} parent=1 // pred_region
      %13 = vsyncadd [#allocation3], 0
      %s15 = sshll.u32 %s0, 4
      %s16 = int_to_ptr.hbm [resolvable:$true] %s15
      %s17 = sshll.u32 [#allocation2], 4
      %s18 = int_to_ptr.vmem [resolvable:$true] %s17
      %20 = dma.hbm_to_vmem [thread:$0]  %s16, 64, %s18, [#allocation3]
    $region5: #{tpu_custom_call.1} parent=1 // pred_fallthru
      _
    // Predicated region
    $region6: #{tpu_custom_call.1} parent=1 // pred_check
      _
    $region7: #{tpu_custom_call.1} parent=1 // pred_check_branch
      %22 = sbr.rel (0) target = $region9
    $region8: #{tpu_custom_call.1} parent=1 // pred_region
      %24 = vsyncadd [#allocation6], 0
      %s26 = sshll.u32 %s1, 4
      %s27 = int_to_ptr.hbm [resolvable:$true] %s26
      %s28 = sshll.u32 [#allocation5], 4
      %s29 = int_to_ptr.vmem [resolvable:$true] %s28
      %31 = dma.hbm_to_vmem [thread:$0]  %s27, 32, %s29, [#allocation6]
    $region9: #{tpu_custom_call.1} parent=1 // pred_fallthru
      _
    // Predicated region
    $region10: #{tpu_custom_call.1} parent=1 // pred_check
      _
    $region11: #{tpu_custom_call.1} parent=1 // pred_check_branch
      %33 = sbr.rel (0) target = $region13
    $region12: #{tpu_custom_call.1} parent=1 // pred_region
      %35 = dma.done [#allocation3], 64
    $region13: #{tpu_custom_call.1} parent=1 // pred_fallthru
      _
    // Predicated region
    $region14: #{tpu_custom_call.1} parent=1 // pred_check
      _
    $region15: #{tpu_custom_call.1} parent=1 // pred_check_branch
      %37 = sbr.rel (0) target = $region17
    $region16: #{tpu_custom_call.1} parent=1 // pred_region
      %39 = dma.done [#allocation6], 32
    $region17: #{tpu_custom_call.1} parent=1 // pred_fallthru
      _
    %v40 = vld [vmem:[#allocation2] sm:$0xf]
    %v41 = vld [vmem:[#allocation5] sm:$0x3]
    %v43 = vperm.slane %v41, 0
    %v44 = vperm.slane %v41, 1
    %v45 = vrot.slane %v44, 6
    %vm46 = vcmask 1041408
    %v47 = vsel %vm46, %v43, %v45
    %v49 = vadd.f32 %v40, %v47
    %50 = vst [vmem:[#allocation7] sm:$0xf] %v49
    // Predicated region
    $region18: #{tpu_custom_call.1} parent=1 // pred_check
      _
    $region19: #{tpu_custom_call.1} parent=1 // pred_check_branch
      %52 = sbr.rel (0) target = $region21
    $region20: #{tpu_custom_call.1} parent=1 // pred_region
      %54 = vsyncadd [#allocation4], 0
      %s56 = sshll.u32 [#allocation7], 4
      %s57 = int_to_ptr.vmem [resolvable:$true] %s56
      %s58 = sshll.u32 %s2, 4
      %s59 = int_to_ptr.hbm [resolvable:$true] %s58
      %61 = dma.vmem_to_hbm [thread:$0]  %s57, 64, %s59, [#allocation4]
    $region21: #{tpu_custom_call.1} parent=1 // pred_fallthru
      _
    // Predicated region
    $region22: #{tpu_custom_call.1} parent=1 // pred_check
      _
    $region23: #{tpu_custom_call.1} parent=1 // pred_check_branch
      %63 = sbr.rel (0) target = $region25
    $region24: #{tpu_custom_call.1} parent=1 // pred_region
      %65 = dma.done [#allocation4], 64
    $region25: #{tpu_custom_call.1} parent=1 // pred_fallthru
      _
    %66 = vsyncpa [#allocation3], 1
    %67 = vsyncpa [#allocation6], 1
    %68 = vsyncpa [#allocation4], 1

</llo_original>
